<compile_context>
chip_gen: v5e
topology: v5e:2x2
jax: 0.10.0
libtpu: 0.0.40
codegen_flags: <defaults>
</compile_context>

<pallas_src>
import jax
import jax.numpy as jnp
from jax import lax
from jax.experimental import pallas as pl
from jax.experimental.pallas import tpu as pltpu


def _nl_block_kernel(x_ref, wt_ref, bt_ref, wpg_ref, bpg_ref, wz_ref, shift_ref,
                     out_ref):
    """One (batch, query-tile) grid step.  Channels-first, spatial in lanes.

    Shapes:
      x_ref     : (C, S)        float32   full spatial extent (keys/values)
      wt_ref    : (Ci, C)       bfloat16  theta 1x1-conv weight
      bt_ref    : (Ci, 1)       float32
      wpg_ref   : (2*Ci+1, C)   bfloat16  [w_phi ; w_g ; zeros] fused weight
      bpg_ref   : (2*Ci+1, 1)   float32   [b_phi ; b_g ; 1.0 ] fused bias
      wz_ref    : (C, Ci)       bfloat16  BN-scale-folded W_z weight
      shift_ref : (C, 1)        float32   folded  bn_scale*b_z + bn_shift
      out_ref   : (C, Tq)       float32
    """
    tq = out_ref.shape[-1]
    ci = wt_ref.shape[0]
    qs = pl.multiple_of(pl.program_id(1) * tq, tq)

    x_keys = x_ref[...]                                      # (C, S)  f32
    x_q = x_ref[:, pl.ds(qs, tq)]                            # (C, Tq) f32
    x_keys_b = x_keys.astype(jnp.bfloat16)
    x_q_b = x_q.astype(jnp.bfloat16)

    # theta for this query tile only: (Ci, Tq)
    theta = jnp.dot(wt_ref[...], x_q_b,
                    preferred_element_type=jnp.float32) + bt_ref[...]

    # fused phi | g | ones over all keys: (2*Ci+1, S)
    pgo = jnp.dot(wpg_ref[...], x_keys_b,
                  preferred_element_type=jnp.float32) + bpg_ref[...]
    phi = pgo[:ci, :]                                        # (Ci, S)
    g_aug = pgo[ci:, :]                                      # (Ci+1, S): g rows + ones row

    # scores f[i, j] = sum_c theta[c, i] * phi[c, j]  ->  (Tq, S)
    f = lax.dot_general(theta.astype(jnp.bfloat16), phi.astype(jnp.bfloat16),
                        (((0,), (0,)), ((), ())),
                        preferred_element_type=jnp.float32)

    # softmax numerator only; normalization deferred past the PV matmul
    p = jnp.exp(f - jnp.max(f, axis=-1, keepdims=True))      # (Tq, S) f32

    # y_aug[c, i] = sum_j g_aug[c, j] * p[i, j]  ->  (Ci+1, Tq)
    # last row == ones @ p^T == softmax denominator, already a (1, Tq) row.
    y_aug = lax.dot_general(g_aug.astype(jnp.bfloat16), p.astype(jnp.bfloat16),
                            (((1,), (1,)), ((), ())),
                            preferred_element_type=jnp.float32)
    inv_denom = pl.reciprocal(y_aug[ci:ci + 1, :], approx=True)   # (1, Tq)
    y = y_aug[:ci, :] * inv_denom                            # (Ci, Tq)

    # W_z with folded BatchNorm, then residual (residual stays f32)
    w_y = jnp.dot(wz_ref[...], y.astype(jnp.bfloat16),
                  preferred_element_type=jnp.float32) + shift_ref[...]
    out_ref[...] = (w_y + x_q).astype(out_ref.dtype)


def _pick_query_tile(s):
    """Largest lane-aligned query tile that divides S (falls back to full S)."""
    if s <= 512:
        return s
    for t in (512, 384, 256, 128):
        if s % t == 0:
            return t
    return s


def nl_block_nd_embedded(x_nchw, params, *, query_tile=None):
    """Forward pass of NLBlockND (mode='embedded', dimension=2, bn_layer=True).

    x_nchw: (N, C, H, W) float32
    params: dict of weights in PyTorch conv orientation (see make_params).
    Returns (N, C, H, W) float32.
    """
    n, c, h, w = x_nchw.shape
    s = h * w
    ci = params["w_g"].shape[0]

    # NCHW -> (N, C, S): free reshape, no transposes; lane dim = S.
    x = x_nchw.reshape(n, c, s)

    # Fold eval-mode BatchNorm into W_z:  (Wz y + bz)*scale + shift
    #   == (scale*Wz) y + (scale*bz + shift)
    eps = 1e-5
    bn_scale = params["bn_gamma"] / jnp.sqrt(params["bn_var"] + eps)       # (C,)
    bn_shift = params["bn_beta"] - params["bn_mean"] * bn_scale            # (C,)
    wz_eff = (bn_scale[:, None] * params["w_z"]).astype(jnp.bfloat16)      # (C, Ci)
    shift_eff = (bn_scale * params["b_z"] + bn_shift).reshape(c, 1)        # (C, 1)

    # Fuse phi | g | ones-row into one projection (one MXU push for the key
    # side; the ones row yields the softmax denominator from the PV matmul).
    w_pg = jnp.concatenate(
        [params["w_phi"], params["w_g"], jnp.zeros((1, c), jnp.float32)],
        axis=0).astype(jnp.bfloat16)                                       # (2Ci+1, C)
    b_pg = jnp.concatenate(
        [params["b_phi"], params["b_g"], jnp.ones((1,), jnp.float32)],
        axis=0).reshape(2 * ci + 1, 1)                                     # (2Ci+1, 1)

    w_t = params["w_theta"].astype(jnp.bfloat16)                           # (Ci, C)
    b_t = params["b_theta"].reshape(ci, 1)                                 # (Ci, 1)

    tq = _pick_query_tile(s) if query_tile is None else query_tile
    num_q = s // tq

    grid_spec = pltpu.PrefetchScalarGridSpec(
        num_scalar_prefetch=0,
        grid=(n, num_q),
        in_specs=[
            pl.BlockSpec((None, c, s), lambda b, q: (b, 0, 0)),   # x (full keys)
            pl.BlockSpec((ci, c), lambda b, q: (0, 0)),           # w_theta
            pl.BlockSpec((ci, 1), lambda b, q: (0, 0)),           # b_theta
            pl.BlockSpec((2 * ci + 1, c), lambda b, q: (0, 0)),   # w_phi|w_g|0
            pl.BlockSpec((2 * ci + 1, 1), lambda b, q: (0, 0)),   # b_phi|b_g|1
            pl.BlockSpec((c, ci), lambda b, q: (0, 0)),           # scale*W_z
            pl.BlockSpec((c, 1), lambda b, q: (0, 0)),            # folded shift
        ],
        out_specs=pl.BlockSpec((None, c, tq), lambda b, q: (b, 0, q)),
    )

    out = pl.pallas_call(
        _nl_block_kernel,
        out_shape=jax.ShapeDtypeStruct((n, c, s), x.dtype),
        grid_spec=grid_spec,
        compiler_params=pltpu.CompilerParams(
            dimension_semantics=("parallel", "parallel")),
    )(x, w_t, b_t, w_pg, b_pg, wz_eff, shift_eff)

    return out.reshape(n, c, h, w)


def make_params(key, in_channels, inter_channels):
    """Parameters in PyTorch conv orientation: 1x1-conv weight == (Cout, Cin).

    NOTE: the PyTorch module initializes BatchNorm gamma/beta to 0 (the block
    starts as an identity).  Here the BN parameters are set to non-trivial
    values so the correctness check actually exercises the attention branch;
    gamma=beta=0 is of course also supported by the forward pass.
    """
    k = jax.random.split(key, 12)
    s = 0.1
    c, ci = in_channels, inter_channels
    return {
        "w_g":      s * jax.random.normal(k[0], (ci, c), jnp.float32),
        "b_g":      s * jax.random.normal(k[1], (ci,), jnp.float32),
        "w_theta":  s * jax.random.normal(k[2], (ci, c), jnp.float32),
        "b_theta":  s * jax.random.normal(k[3], (ci,), jnp.float32),
        "w_phi":    s * jax.random.normal(k[4], (ci, c), jnp.float32),
        "b_phi":    s * jax.random.normal(k[5], (ci,), jnp.float32),
        "w_z":      s * jax.random.normal(k[6], (c, ci), jnp.float32),
        "b_z":      s * jax.random.normal(k[7], (c,), jnp.float32),
        "bn_gamma": 1.0 + s * jax.random.normal(k[8], (c,), jnp.float32),
        "bn_beta":  s * jax.random.normal(k[9], (c,), jnp.float32),
        "bn_mean":  s * jax.random.normal(k[10], (c,), jnp.float32),
        "bn_var":   1.0 + 0.5 * jax.random.uniform(k[11], (c,), jnp.float32),
    }


def reference_forward(x_nchw, params):
    """Pure-JAX f32 reference replicating the PyTorch forward (embedded mode)."""
    n, c, h, w = x_nchw.shape
    s = h * w
    x = x_nchw.reshape(n, c, s)                                            # (N, C, S)

    g_x = jnp.einsum("kc,ncs->nks", params["w_g"], x) + params["b_g"][None, :, None]
    theta = jnp.einsum("kc,ncs->nks", params["w_theta"], x) + params["b_theta"][None, :, None]
    phi = jnp.einsum("kc,ncs->nks", params["w_phi"], x) + params["b_phi"][None, :, None]
    f = jnp.einsum("nki,nkj->nij", theta, phi)                             # (N, S, S)
    p = jax.nn.softmax(f, axis=-1)
    y = jnp.einsum("nij,nkj->nki", p, g_x)                                 # (N, Ci, S)
    w_y = jnp.einsum("ck,nks->ncs", params["w_z"], y) + params["b_z"][None, :, None]
    eps = 1e-5
    scale = params["bn_gamma"] / jnp.sqrt(params["bn_var"] + eps)
    shift = params["bn_beta"] - params["bn_mean"] * scale
    w_y = w_y * scale[None, :, None] + shift[None, :, None]
    z = w_y + x
    return z.reshape(n, c, h, w)


if __name__ == "__main__":
    # Shapes consistent with NLBlockND(in_channels=4, dimension=2):
    #   x: (N=2, C=4, H=16, W=16); inter_channels defaults to C // 2 = 2.
    N, C, H, W = 2, 4, 16, 16
    CI = C // 2

    key = jax.random.PRNGKey(0)
    kx, kp = jax.random.split(key)
    x = jax.random.normal(kx, (N, C, H, W), jnp.float32)
    params = make_params(kp, C, CI)

    out = jax.block_until_ready(nl_block_nd_embedded(x, params))
    ref = reference_forward(x, params)

    assert out.shape == (N, C, H, W)
    # bf16 MXU operands + approximate reciprocal => looser tolerance than f32.
    assert jnp.allclose(out, ref, atol=2e-2, rtol=2e-2), "mismatch vs reference"

    print("KERNEL_OK")
</pallas_src>

<mosaic_0001>
module attributes {stable_mosaic.version = 11 : i64} {
  func.func @_nl_block_kernel(%arg0: i32, %arg1: i32, %arg2: memref<1x4x256xf32, #tpu.memory_space<vmem>>, %arg3: memref<2x4xbf16, #tpu.memory_space<vmem>>, %arg4: memref<2x1xf32, #tpu.memory_space<vmem>>, %arg5: memref<5x4xbf16, #tpu.memory_space<vmem>>, %arg6: memref<5x1xf32, #tpu.memory_space<vmem>>, %arg7: memref<4x2xbf16, #tpu.memory_space<vmem>>, %arg8: memref<4x1xf32, #tpu.memory_space<vmem>>, %arg9: memref<1x4x256xf32, #tpu.memory_space<vmem>>) attributes {dimension_semantics = [#tpu.dimension_semantics<parallel>, #tpu.dimension_semantics<parallel>], iteration_bounds = array<i64: 2, 1>, scalar_prefetch = 0 : i64, scratch_operands = 0 : i64, tpu.core_type = #tpu.core_type<tc>, window_params = [{transform_indices = @transform_0, window_bounds = array<i64: 1, 4, 256>}, {pipeline_mode = #tpu.pipeline_mode<synchronous>, transform_indices = @transform_1, window_bounds = array<i64: 2, 4>}, {pipeline_mode = #tpu.pipeline_mode<synchronous>, transform_indices = @transform_2, window_bounds = array<i64: 2, 1>}, {pipeline_mode = #tpu.pipeline_mode<synchronous>, transform_indices = @transform_3, window_bounds = array<i64: 5, 4>}, {pipeline_mode = #tpu.pipeline_mode<synchronous>, transform_indices = @transform_4, window_bounds = array<i64: 5, 1>}, {pipeline_mode = #tpu.pipeline_mode<synchronous>, transform_indices = @transform_5, window_bounds = array<i64: 4, 2>}, {pipeline_mode = #tpu.pipeline_mode<synchronous>, transform_indices = @transform_6, window_bounds = array<i64: 4, 1>}, {transform_indices = @transform_7, window_bounds = array<i64: 1, 4, 256>}]} {
    %c256_i32 = arith.constant 256 : i32
    %0 = arith.muli %arg1, %c256_i32 : i32
    %1 = tpu.assume_multiple %0, 256 : i32
    %c0 = arith.constant 0 : index
    %c0_0 = arith.constant 0 : index
    %c0_1 = arith.constant 0 : index
    %2 = vector.load %arg2[%c0, %c0_0, %c0_1] : memref<1x4x256xf32, #tpu.memory_space<vmem>>, vector<1x4x256xf32>
    %3 = vector.shape_cast %2 : vector<1x4x256xf32> to vector<4x256xf32>
    %c0_2 = arith.constant 0 : index
    %c0_3 = arith.constant 0 : index
    %4 = arith.index_cast %1 : i32 to index
    %5 = vector.load %arg2[%c0_2, %c0_3, %4] : memref<1x4x256xf32, #tpu.memory_space<vmem>>, vector<1x4x256xf32>
    %6 = vector.shape_cast %5 : vector<1x4x256xf32> to vector<4x256xf32>
    %7 = arith.truncf %3 : vector<4x256xf32> to vector<4x256xbf16>
    %8 = arith.truncf %6 : vector<4x256xf32> to vector<4x256xbf16>
    %c0_4 = arith.constant 0 : index
    %c0_5 = arith.constant 0 : index
    %9 = vector.load %arg3[%c0_4, %c0_5] : memref<2x4xbf16, #tpu.memory_space<vmem>>, vector<2x4xbf16>
    %cst = arith.constant dense<0.000000e+00> : vector<2x256xf32>
    %10 = tpu.matmul %9, %8, %cst {dimension_numbers = #tpu.dot_dimension_numbers<[1], [0], [0], [1], [0, 0, 1, 1], [], []>} : vector<2x4xbf16>, vector<4x256xbf16>, vector<2x256xf32> -> vector<2x256xf32>
    %c0_6 = arith.constant 0 : index
    %c0_7 = arith.constant 0 : index
    %11 = vector.load %arg4[%c0_6, %c0_7] : memref<2x1xf32, #tpu.memory_space<vmem>>, vector<2x1xf32>
    %12 = vector.broadcast %11 : vector<2x1xf32> to vector<2x256xf32>
    %13 = arith.addf %10, %12 : vector<2x256xf32>
    %c0_8 = arith.constant 0 : index
    %c0_9 = arith.constant 0 : index
    %14 = vector.load %arg5[%c0_8, %c0_9] : memref<5x4xbf16, #tpu.memory_space<vmem>>, vector<5x4xbf16>
    %cst_10 = arith.constant dense<0.000000e+00> : vector<5x256xf32>
    %15 = tpu.matmul %14, %7, %cst_10 {dimension_numbers = #tpu.dot_dimension_numbers<[1], [0], [0], [1], [0, 0, 1, 1], [], []>} : vector<5x4xbf16>, vector<4x256xbf16>, vector<5x256xf32> -> vector<5x256xf32>
    %c0_11 = arith.constant 0 : index
    %c0_12 = arith.constant 0 : index
    %16 = vector.load %arg6[%c0_11, %c0_12] : memref<5x1xf32, #tpu.memory_space<vmem>>, vector<5x1xf32>
    %17 = vector.broadcast %16 : vector<5x1xf32> to vector<5x256xf32>
    %18 = arith.addf %15, %17 : vector<5x256xf32>
    %19 = vector.extract_strided_slice %18 {offsets = [0, 0], sizes = [2, 256], strides = [1, 1]} : vector<5x256xf32> to vector<2x256xf32>
    %20 = vector.extract_strided_slice %18 {offsets = [2, 0], sizes = [3, 256], strides = [1, 1]} : vector<5x256xf32> to vector<3x256xf32>
    %21 = arith.truncf %13 : vector<2x256xf32> to vector<2x256xbf16>
    %22 = arith.truncf %19 : vector<2x256xf32> to vector<2x256xbf16>
    %cst_13 = arith.constant dense<0.000000e+00> : vector<256x256xf32>
    %23 = tpu.matmul %21, %22, %cst_13 {dimension_numbers = #tpu.dot_dimension_numbers<[0], [0], [1], [1], [0, 1, 1, 1], [], []>} : vector<2x256xbf16>, vector<2x256xbf16>, vector<256x256xf32> -> vector<256x256xf32>
    %cst_14 = arith.constant dense<0xFF800000> : vector<256xf32>
    %24 = vector.multi_reduction <maximumf>, %23, %cst_14 [1] : vector<256x256xf32> to vector<256xf32>
    %25 = vector.shape_cast %24 : vector<256xf32> to vector<256x1xf32>
    %26 = vector.broadcast %25 : vector<256x1xf32> to vector<256x256xf32>
    %27 = arith.subf %23, %26 : vector<256x256xf32>
    %28 = math.exp %27 : vector<256x256xf32>
    %29 = arith.truncf %20 : vector<3x256xf32> to vector<3x256xbf16>
    %30 = arith.truncf %28 : vector<256x256xf32> to vector<256x256xbf16>
    %cst_15 = arith.constant dense<0.000000e+00> : vector<3x256xf32>
    %31 = tpu.matmul %29, %30, %cst_15 {dimension_numbers = #tpu.dot_dimension_numbers<[1], [1], [0], [0], [0, 0, 1, 0], [], []>} : vector<3x256xbf16>, vector<256x256xbf16>, vector<3x256xf32> -> vector<3x256xf32>
    %32 = vector.extract_strided_slice %31 {offsets = [2, 0], sizes = [1, 256], strides = [1, 1]} : vector<3x256xf32> to vector<1x256xf32>
    %33 = tpu.reciprocal %32 {approx = true} : vector<1x256xf32> -> vector<1x256xf32>
    %34 = vector.extract_strided_slice %31 {offsets = [0, 0], sizes = [2, 256], strides = [1, 1]} : vector<3x256xf32> to vector<2x256xf32>
    %35 = vector.broadcast %33 : vector<1x256xf32> to vector<2x256xf32>
    %36 = arith.mulf %34, %35 : vector<2x256xf32>
    %c0_16 = arith.constant 0 : index
    %c0_17 = arith.constant 0 : index
    %37 = vector.load %arg7[%c0_16, %c0_17] : memref<4x2xbf16, #tpu.memory_space<vmem>>, vector<4x2xbf16>
    %38 = arith.truncf %36 : vector<2x256xf32> to vector<2x256xbf16>
    %cst_18 = arith.constant dense<0.000000e+00> : vector<4x256xf32>
    %39 = tpu.matmul %37, %38, %cst_18 {dimension_numbers = #tpu.dot_dimension_numbers<[1], [0], [0], [1], [0, 0, 1, 1], [], []>} : vector<4x2xbf16>, vector<2x256xbf16>, vector<4x256xf32> -> vector<4x256xf32>
    %c0_19 = arith.constant 0 : index
    %c0_20 = arith.constant 0 : index
    %40 = vector.load %arg8[%c0_19, %c0_20] : memref<4x1xf32, #tpu.memory_space<vmem>>, vector<4x1xf32>
    %41 = vector.broadcast %40 : vector<4x1xf32> to vector<4x256xf32>
    %42 = arith.addf %39, %41 : vector<4x256xf32>
    %43 = arith.addf %42, %6 : vector<4x256xf32>
    %c0_21 = arith.constant 0 : index
    %c0_22 = arith.constant 0 : index
    %c0_23 = arith.constant 0 : index
    %44 = vector.load %arg9[%c0_21, %c0_22, %c0_23] : memref<1x4x256xf32, #tpu.memory_space<vmem>>, vector<1x4x256xf32>
    %45 = vector.shape_cast %44 : vector<1x4x256xf32> to vector<4x256xf32>
    %46 = vector.shape_cast %43 : vector<4x256xf32> to vector<1x4x256xf32>
    tpu.vector_store %arg9[%c0_21, %c0_22, %c0_23], %46 {strides = array<i32>} : memref<1x4x256xf32, #tpu.memory_space<vmem>>, vector<1x4x256xf32>,
    return
  }
  func.func @transform_0(%arg0: i32, %arg1: i32) -> (i32, i32, i32) {
    %c0_i32 = arith.constant 0 : i32
    %c0_i32_0 = arith.constant 0 : i32
    %c0_i32_1 = arith.constant 0 : i32
    return %arg0, %c0_i32, %c0_i32_0 : i32, i32, i32
  }
  func.func @transform_1(%arg0: i32, %arg1: i32) -> (i32, i32) {
    %c0_i32 = arith.constant 0 : i32
    %c0_i32_0 = arith.constant 0 : i32
    %c0_i32_1 = arith.constant 0 : i32
    return %c0_i32, %c0_i32_0 : i32, i32
  }
  func.func @transform_2(%arg0: i32, %arg1: i32) -> (i32, i32) {
    %c0_i32 = arith.constant 0 : i32
    %c0_i32_0 = arith.constant 0 : i32
    %c0_i32_1 = arith.constant 0 : i32
    return %c0_i32, %c0_i32_0 : i32, i32
  }
  func.func @transform_3(%arg0: i32, %arg1: i32) -> (i32, i32) {
    %c0_i32 = arith.constant 0 : i32
    %c0_i32_0 = arith.constant 0 : i32
    %c0_i32_1 = arith.constant 0 : i32
    return %c0_i32, %c0_i32_0 : i32, i32
  }
  func.func @transform_4(%arg0: i32, %arg1: i32) -> (i32, i32) {
    %c0_i32 = arith.constant 0 : i32
    %c0_i32_0 = arith.constant 0 : i32
    %c0_i32_1 = arith.constant 0 : i32
    return %c0_i32, %c0_i32_0 : i32, i32
  }
  func.func @transform_5(%arg0: i32, %arg1: i32) -> (i32, i32) {
    %c0_i32 = arith.constant 0 : i32
    %c0_i32_0 = arith.constant 0 : i32
    %c0_i32_1 = arith.constant 0 : i32
    return %c0_i32, %c0_i32_0 : i32, i32
  }
  func.func @transform_6(%arg0: i32, %arg1: i32) -> (i32, i32) {
    %c0_i32 = arith.constant 0 : i32
    %c0_i32_0 = arith.constant 0 : i32
    %c0_i32_1 = arith.constant 0 : i32
    return %c0_i32, %c0_i32_0 : i32, i32
  }
  func.func @transform_7(%arg0: i32, %arg1: i32) -> (i32, i32, i32) {
    %c0_i32 = arith.constant 0 : i32
    %c0_i32_0 = arith.constant 0 : i32
    return %arg0, %c0_i32, %arg1 : i32, i32, i32
  }
}

</mosaic_0001>

<llo_original>
// kernel: tpu_custom_call.1
$region0: #{tpu_custom_call.1}
  #allocation0 [shape = 'u32[]', space=smem, size = 0x4, offset = 0x4, fixed_abs, tag = 'smem constant byte address 0x4 - core index']
  #allocation1 [shape = 'u32[72,128]{1,0:T(1,128)}', space=vmem, size = 0x9000, scoped, tag = 'internal scratch']
  %s0 = inlined_call_operand.hbm [shape: f32[2,4,256], index: 0, kind: input, shape index: {}]
  %s1 = inlined_call_operand.vmem [shape: bf16[2,4], index: 1, kind: input, shape index: {}]
  %s2 = inlined_call_operand.vmem [shape: f32[2,1], index: 2, kind: input, shape index: {}]
  %s3 = inlined_call_operand.vmem [shape: bf16[5,4], index: 3, kind: input, shape index: {}]
  %s4 = inlined_call_operand.vmem [shape: f32[5,1], index: 4, kind: input, shape index: {}]
  %s5 = inlined_call_operand.vmem [shape: bf16[4,2], index: 5, kind: input, shape index: {}]
  %s6 = inlined_call_operand.vmem [shape: f32[4,1], index: 6, kind: input, shape index: {}]
  %s7 = inlined_call_operand.hbm [shape: f32[2,4,256], index: 7, kind: output, shape index: {}]
  %s8 = sld [smem:[#allocation0]]
  $region65: #{tpu_custom_call.1} parent=0
    _
  %s10 = ssub.s32 1, %s8
  %s11 = scalar_select 0, %s10, %s8
  $region1: #{tpu_custom_call.1} parent=0
    #allocation2 [shape = 'u8[8192]{0}', space=vmem, size = 0x2000, scoped, tag = 'input window, operand 0']
    #allocation3 [shape = 's32[2]{0}', space=sflag, size = 0x8, scoped, tag = 'scoped memory for tpu_custom_call.1']
    #allocation4 [shape = 's32[2]{0}', space=sflag, size = 0x8, scoped, tag = 'scoped memory for tpu_custom_call.1']
    #allocation5 [shape = 'u8[8192]{0}', space=vmem, size = 0x2000, scoped, tag = 'output window, operand 0']
    %12 = vsyncpa [#allocation3], 0
    %s13 = scalar_lea.sflag [#allocation3], 1
    %14 = vsyncpa %s13, 0
    %15 = vsyncpa [#allocation4], 0
    %s16 = scalar_lea.sflag [#allocation4], 1
    %17 = vsyncpa %s16, 0
    loop: start=0, step=1, limit=4
    $region2: #{tpu_custom_call.1} parent=1 // loop_pre_header
      _
    $region3: #{tpu_custom_call.1} parent=1 // loop_header
      %s19 = sphi 0, %s23
      %p20 = scmp.ge.s32.totalorder %s19, 4
      %s26 = sphi 0, %s38
      %s27 = sphi 0, %s34
      %s28 = sphi 0, %s26
      %s29 = sphi 0, %s27
      %s30 = sphi 0, %s28
      %s31 = sphi 0, %s29
      %s41 = sphi 0, %s43
      %s44 = sphi 0, %s41
      %s45 = sphi 0, %s44
      %s61 = sphi 0, %s45
      %s65 = sphi 0, %s65
      %s67 = sphi 0, %s65
      %s68 = sphi 0, %s67
      %s82 = sphi 0, %s68
      %s86 = sphi 0, %s86
      %s88 = sphi 0, %s86
      %s89 = sphi 0, %s88
      %s103 = sphi 0, %s89
      %s107 = sphi 0, %s107
      %s109 = sphi 0, %s107
      %s110 = sphi 0, %s109
      %s124 = sphi 0, %s110
      %s128 = sphi 0, %s128
      %s130 = sphi 0, %s128
      %s131 = sphi 0, %s130
      %s145 = sphi 0, %s131
      %s149 = sphi 0, %s149
      %s151 = sphi 0, %s149
      %s152 = sphi 0, %s151
      %s166 = sphi 0, %s152
      %s170 = sphi 0, %s170
      %s172 = sphi 0, %s170
      %s173 = sphi 0, %s172
      %s187 = sphi 0, %s173
      %s195 = sphi 0, %s197
      %s198 = sphi 0, %s195
      %s199 = sphi 0, %s198
      %s215 = sphi 0, %s199
    $region4: #{tpu_custom_call.1} parent=1 // loop_header_branch
      %22 = sbr.rel (%p20) target = $region8
    $region5: #{tpu_custom_call.1} parent=1 // loop_body
      %s24 = ssub.s32 %s19, 1
      %s25 = ssub.s32 %s19, 2
      %s32 = sadd.s32 1, %s27
      %p33 = scmp.ge.s32.totalorder %s32, 1
      %s34 = scalar_select %p33, 0, %s32
      %s35 = sadd.s32 1, %s26
      %s36 = scalar_select %p33, %s35, %s26
      %p37 = scmp.ge.s32.totalorder %s36, 2
      %s38 = scalar_select %p37, 0, %s36
      %s39 = ssub.s32 %s26, %s38
      %p40 = scmp.eq.s32.totalorder %s39, 0
      %s42 = sadd.s32 %s41, 1
      %s43 = scalar_select %p40, %s41, %s42
      %p46 = pneg %p40
      %p47 = scmp.eq.s32.totalorder %s19, 1
      %p48 = por %p46, %p47
      %p49 = scmp.ne.s32.totalorder %s41, %s44
      %p50 = scmp.eq.s32.totalorder %s19, 0
      %p51 = por %p49, %p50
      %p52 = scmp.ne.s32.totalorder %s41, %s44
      %p53 = scmp.eq.s32.totalorder %s24, 1
      %p54 = por %p52, %p53
      %p55 = scmp.ne.s32.totalorder %s44, %s45
      %p56 = scmp.eq.s32.totalorder %s24, 0
      %p57 = por %p55, %p56
      %p58 = scmp.ne.s32.totalorder %s44, %s45
      %p59 = scmp.eq.s32.totalorder %s25, 1
      %p60 = por %p58, %p59
      %p62 = scmp.ne.s32.totalorder %s45, %s61
      %p63 = scmp.eq.s32.totalorder %s25, 0
      %p64 = por %p62, %p63
      %s66 = sadd.s32 %s65, 1
      %p69 = scmp.eq.s32.totalorder %s19, 1
      %p70 = scmp.ne.s32.totalorder %s65, %s67
      %p71 = scmp.eq.s32.totalorder %s19, 0
      %p72 = por %p70, %p71
      %p73 = scmp.ne.s32.totalorder %s65, %s67
      %p74 = scmp.eq.s32.totalorder %s24, 1
      %p75 = por %p73, %p74
      %p76 = scmp.ne.s32.totalorder %s67, %s68
      %p77 = scmp.eq.s32.totalorder %s24, 0
      %p78 = por %p76, %p77
      %p79 = scmp.ne.s32.totalorder %s67, %s68
      %p80 = scmp.eq.s32.totalorder %s25, 1
      %p81 = por %p79, %p80
      %p83 = scmp.ne.s32.totalorder %s68, %s82
      %p84 = scmp.eq.s32.totalorder %s25, 0
      %p85 = por %p83, %p84
      %s87 = sadd.s32 %s86, 1
      %p90 = scmp.eq.s32.totalorder %s19, 1
      %p91 = scmp.ne.s32.totalorder %s86, %s88
      %p92 = scmp.eq.s32.totalorder %s19, 0
      %p93 = por %p91, %p92
      %p94 = scmp.ne.s32.totalorder %s86, %s88
      %p95 = scmp.eq.s32.totalorder %s24, 1
      %p96 = por %p94, %p95
      %p97 = scmp.ne.s32.totalorder %s88, %s89
      %p98 = scmp.eq.s32.totalorder %s24, 0
      %p99 = por %p97, %p98
      %p100 = scmp.ne.s32.totalorder %s88, %s89
      %p101 = scmp.eq.s32.totalorder %s25, 1
      %p102 = por %p100, %p101
      %p104 = scmp.ne.s32.totalorder %s89, %s103
      %p105 = scmp.eq.s32.totalorder %s25, 0
      %p106 = por %p104, %p105
      %s108 = sadd.s32 %s107, 1
      %p111 = scmp.eq.s32.totalorder %s19, 1
      %p112 = scmp.ne.s32.totalorder %s107, %s109
      %p113 = scmp.eq.s32.totalorder %s19, 0
      %p114 = por %p112, %p113
      %p115 = scmp.ne.s32.totalorder %s107, %s109
      %p116 = scmp.eq.s32.totalorder %s24, 1
      %p117 = por %p115, %p116
      %p118 = scmp.ne.s32.totalorder %s109, %s110
      %p119 = scmp.eq.s32.totalorder %s24, 0
      %p120 = por %p118, %p119
      %p121 = scmp.ne.s32.totalorder %s109, %s110
      %p122 = scmp.eq.s32.totalorder %s25, 1
      %p123 = por %p121, %p122
      %p125 = scmp.ne.s32.totalorder %s110, %s124
      %p126 = scmp.eq.s32.totalorder %s25, 0
      %p127 = por %p125, %p126
      %s129 = sadd.s32 %s128, 1
      %p132 = scmp.eq.s32.totalorder %s19, 1
      %p133 = scmp.ne.s32.totalorder %s128, %s130
      %p134 = scmp.eq.s32.totalorder %s19, 0
      %p135 = por %p133, %p134
      %p136 = scmp.ne.s32.totalorder %s128, %s130
      %p137 = scmp.eq.s32.totalorder %s24, 1
      %p138 = por %p136, %p137
      %p139 = scmp.ne.s32.totalorder %s130, %s131
      %p140 = scmp.eq.s32.totalorder %s24, 0
      %p141 = por %p139, %p140
      %p142 = scmp.ne.s32.totalorder %s130, %s131
      %p143 = scmp.eq.s32.totalorder %s25, 1
      %p144 = por %p142, %p143
      %p146 = scmp.ne.s32.totalorder %s131, %s145
      %p147 = scmp.eq.s32.totalorder %s25, 0
      %p148 = por %p146, %p147
      %s150 = sadd.s32 %s149, 1
      %p153 = scmp.eq.s32.totalorder %s19, 1
      %p154 = scmp.ne.s32.totalorder %s149, %s151
      %p155 = scmp.eq.s32.totalorder %s19, 0
      %p156 = por %p154, %p155
      %p157 = scmp.ne.s32.totalorder %s149, %s151
      %p158 = scmp.eq.s32.totalorder %s24, 1
      %p159 = por %p157, %p158
      %p160 = scmp.ne.s32.totalorder %s151, %s152
      %p161 = scmp.eq.s32.totalorder %s24, 0
      %p162 = por %p160, %p161
      %p163 = scmp.ne.s32.totalorder %s151, %s152
      %p164 = scmp.eq.s32.totalorder %s25, 1
      %p165 = por %p163, %p164
      %p167 = scmp.ne.s32.totalorder %s152, %s166
      %p168 = scmp.eq.s32.totalorder %s25, 0
      %p169 = por %p167, %p168
      %s171 = sadd.s32 %s170, 1
      %p174 = scmp.eq.s32.totalorder %s19, 1
      %p175 = scmp.ne.s32.totalorder %s170, %s172
      %p176 = scmp.eq.s32.totalorder %s19, 0
      %p177 = por %p175, %p176
      %p178 = scmp.ne.s32.totalorder %s170, %s172
      %p179 = scmp.eq.s32.totalorder %s24, 1
      %p180 = por %p178, %p179
      %p181 = scmp.ne.s32.totalorder %s172, %s173
      %p182 = scmp.eq.s32.totalorder %s24, 0
      %p183 = por %p181, %p182
      %p184 = scmp.ne.s32.totalorder %s172, %s173
      %p185 = scmp.eq.s32.totalorder %s25, 1
      %p186 = por %p184, %p185
      %p188 = scmp.ne.s32.totalorder %s173, %s187
      %p189 = scmp.eq.s32.totalorder %s25, 0
      %p190 = por %p188, %p189
      %s191 = ssub.s32 %s26, %s38
      %s192 = ssub.s32 %s27, %s34
      %s193 = sor.u32 %s191, %s192
      %p194 = scmp.eq.s32.totalorder %s193, 0
      %s196 = sadd.s32 %s195, 1
      %s197 = scalar_select %p194, %s195, %s196
      %p200 = pneg %p194
      %p201 = scmp.eq.s32.totalorder %s19, 1
      %p202 = por %p200, %p201
      %p203 = scmp.ne.s32.totalorder %s195, %s198
      %p204 = scmp.eq.s32.totalorder %s19, 0
      %p205 = por %p203, %p204
      %p206 = scmp.ne.s32.totalorder %s195, %s198
      %p207 = scmp.eq.s32.totalorder %s24, 1
      %p208 = por %p206, %p207
      %p209 = scmp.ne.s32.totalorder %s198, %s199
      %p210 = scmp.eq.s32.totalorder %s24, 0
      %p211 = por %p209, %p210
      %p212 = scmp.ne.s32.totalorder %s198, %s199
      %p213 = scmp.eq.s32.totalorder %s25, 1
      %p214 = por %p212, %p213
      %p216 = scmp.ne.s32.totalorder %s199, %s215
      %p217 = scmp.eq.s32.totalorder %s25, 0
      %p218 = por %p216, %p217
      %p219 = scmp.le.s32.totalorder 1, %s19
      %p220 = scmp.lt.s32.totalorder %s19, 3
      %p221 = pnand %p219, %p220
      %p222 = pneg %p221
      // Predicated region
      $region9: #{tpu_custom_call.1} parent=5 // pred_check
        _
      $region10: #{tpu_custom_call.1} parent=5 // pred_check_branch
        %224 = sbr.rel (%p221) target = $region12
      $region11: #{tpu_custom_call.1} parent=5 // pred_region
        %s225 = ssub.s32 %s19, 1
        // Predicated region
        $region13: #{tpu_custom_call.1} parent=11 // pred_check
          %p226 = pneg %p78
        $region14: #{tpu_custom_call.1} parent=11 // pred_check_branch
          %228 = sbr.rel (%p226) target = $region16
        $region15: #{tpu_custom_call.1} parent=11 // pred_region
          _
        $region16: #{tpu_custom_call.1} parent=11 // pred_fallthru
          _
        // Predicated region
        $region17: #{tpu_custom_call.1} parent=11 // pred_check
          %p229 = pneg %p99
        $region18: #{tpu_custom_call.1} parent=11 // pred_check_branch
          %231 = sbr.rel (%p229) target = $region20
        $region19: #{tpu_custom_call.1} parent=11 // pred_region
          _
        $region20: #{tpu_custom_call.1} parent=11 // pred_fallthru
          _
        // Predicated region
        $region21: #{tpu_custom_call.1} parent=11 // pred_check
          %p232 = pneg %p120
        $region22: #{tpu_custom_call.1} parent=11 // pred_check_branch
          %234 = sbr.rel (%p232) target = $region24
        $region23: #{tpu_custom_call.1} parent=11 // pred_region
          _
        $region24: #{tpu_custom_call.1} parent=11 // pred_fallthru
          _
        // Predicated region
        $region25: #{tpu_custom_call.1} parent=11 // pred_check
          %p235 = pneg %p141
        $region26: #{tpu_custom_call.1} parent=11 // pred_check_branch
          %237 = sbr.rel (%p235) target = $region28
        $region27: #{tpu_custom_call.1} parent=11 // pred_region
          _
        $region28: #{tpu_custom_call.1} parent=11 // pred_fallthru
          _
        // Predicated region
        $region29: #{tpu_custom_call.1} parent=11 // pred_check
          %p238 = pneg %p162
        $region30: #{tpu_custom_call.1} parent=11 // pred_check_branch
          %240 = sbr.rel (%p238) target = $region32
        $region31: #{tpu_custom_call.1} parent=11 // pred_region
          _
        $region32: #{tpu_custom_call.1} parent=11 // pred_fallthru
          _
        // Predicated region
        $region33: #{tpu_custom_call.1} parent=11 // pred_check
          %p241 = pneg %p183
        $region34: #{tpu_custom_call.1} parent=11 // pred_check_branch
          %243 = sbr.rel (%p241) target = $region36
        $region35: #{tpu_custom_call.1} parent=11 // pred_region
          _
        $region36: #{tpu_custom_call.1} parent=11 // pred_fallthru
          _
      $region12: #{tpu_custom_call.1} parent=5 // pred_fallthru
        _
      %p244 = scmp.lt.s32.totalorder %s19, 2
      // Predicated region
      $region37: #{tpu_custom_call.1} parent=5 // pred_check
        %p245 = pneg %p244
      $region38: #{tpu_custom_call.1} parent=5 // pred_check_branch
        %247 = sbr.rel (%p245) target = $region40
      $region39: #{tpu_custom_call.1} parent=5 // pred_region
        // Predicated region
        $region41: #{tpu_custom_call.1} parent=39 // pred_check
          %p248 = pneg %p51
        $region42: #{tpu_custom_call.1} parent=39 // pred_check_branch
          %250 = sbr.rel (%p248) target = $region44
        $region43: #{tpu_custom_call.1} parent=39 // pred_region
          %s251 = sand.u32 %s41, 1
          %s252 = scalar_lea.sflag [#allocation3], %s251
          %s253 = sand.u32 %s41, 1
          %s254 = smul.addr %s253, 8
          %s255 = scalar_lea.vmem [#allocation2], %s254
          %257 = vsyncadd %s252, 0
          %s258 = smul.addr %s26, 2
          %s259 = smul.addr %s258, 4
          %s260 = scalar_lea.hbm %s0, %s259
          %s262 = sshll.u32 %s260, 4
          %s263 = int_to_ptr.hbm [resolvable:$true] %s262
          %s264 = sshll.u32 %s255, 4
          %s265 = int_to_ptr.vmem [resolvable:$true] %s264
          %267 = dma.hbm_to_vmem [thread:$0]  %s263, 128, %s265, %s252
        $region44: #{tpu_custom_call.1} parent=39 // pred_fallthru
          _
      $region40: #{tpu_custom_call.1} parent=5 // pred_fallthru
        _
      %p268 = scmp.le.s32.totalorder 1, %s19
      %p269 = scmp.lt.s32.totalorder %s19, 3
      %p270 = pnand %p268, %p269
      %p271 = pneg %p270
      // Predicated region
      $region45: #{tpu_custom_call.1} parent=5 // pred_check
        _
      $region46: #{tpu_custom_call.1} parent=5 // pred_check_branch
        %273 = sbr.rel (%p270) target = $region48
      $region47: #{tpu_custom_call.1} parent=5 // pred_region
        %s274 = ssub.s32 %s19, 1
        %s275 = sand.u32 %s44, 1
        %s276 = scalar_lea.sflag [#allocation3], %s275
        %s277 = sand.u32 %s44, 1
        %s278 = smul.addr %s277, 8
        %s279 = scalar_lea.vmem [#allocation2], %s278
        // Predicated region
        $region49: #{tpu_custom_call.1} parent=47 // pred_check
          %p280 = pneg %p57
        $region50: #{tpu_custom_call.1} parent=47 // pred_check_branch
          %282 = sbr.rel (%p280) target = $region52
        $region51: #{tpu_custom_call.1} parent=47 // pred_region
          %284 = dma.done %s276, 128
        $region52: #{tpu_custom_call.1} parent=47 // pred_fallthru
          _
        %s285 = sand.u32 %s44, 1
        %s286 = scalar_lea.sflag [#allocation3], %s285
        %s287 = sand.u32 %s44, 1
        %s288 = smul.addr %s287, 8
        %s289 = scalar_lea.vmem [#allocation2], %s288
        %p290 = pneg %p57
        %p291 = pneg %p54
        %p292 = pneg %p78
        %p293 = pneg %p75
        %p294 = pneg %p99
        %p295 = pneg %p96
        %p296 = pneg %p120
        %p297 = pneg %p117
        %p298 = pneg %p141
        %p299 = pneg %p138
        %p300 = pneg %p162
        %p301 = pneg %p159
        %p302 = pneg %p183
        %p303 = pneg %p180
        %p304 = pneg %p211
        %p305 = pneg %p208
        %s306 = sand.u32 %s198, 1
        %s307 = scalar_lea.sflag [#allocation4], %s306
        %s308 = sand.u32 %s198, 1
        %s309 = smul.addr %s308, 8
        %s310 = scalar_lea.vmem [#allocation5], %s309
        %s311 = smul.u32 2, %s29
        %s313 = smul.u32 %s29, 256
        %v314 = vld [vmem:[%s279] sm:$0xff]
        %s315 = sshra.s32 %s313, 7
        %s316 = sand.u32 %s313, 127
        %s317 = smul.addr %s315, 4
        %s318 = scalar_lea.vmem %s279, %s317 [#allocation2]
        %v319 = vld [vmem:[%s318] sm:$0xff]
        %321 = vst [vmem:[#allocation1] ss:$2 sm:$0xff] %v314
        %v322 = vld.sshfl [vmem:[#allocation1] sm:$0xff pattern:$0x75316420]
        %v323 = vld.sshfl [vmem:[#allocation1 + $0x8] sm:$0xff pattern:$0x75316420]
        %v326 = vpack.c.bf16 %v322, %v322
        %v327 = vpack.c.bf16 %v323, %v323
        %329 = vst [vmem:[#allocation1] ss:$2 sm:$0xff] %v319
        %v330 = vld.sshfl [vmem:[#allocation1] sm:$0xff pattern:$0x75316420]
        %v331 = vld.sshfl [vmem:[#allocation1 + $0x8] sm:$0xff pattern:$0x75316420]
        %v334 = vpack.c.bf16 %v330, %v330
        %v335 = vpack.c.bf16 %v331, %v331
        %v336 = vld [vmem:[%s1] sm:$0x1]
        %v337 = vld [vmem:[%s2] sm:$0x3]
        %339 = vset.pattern.permute.xlu0 0
        %340 = vperm.xlu0 %339, %v337
        %v341 = vpop.permute.xlu0 %340
        %vm343 = vcmask 31744
        %v345 = vsel %vm343, %v336, 0
        %vm347 = vcmask 1041408
        %v349 = vsel %vm347, %v334, 0
        %v352 = vsel %vm347, %v335, 0
        %354 = vmatpush.bf16.msra.mxu0 0
        %355 = vmatpush.bf16.msra.mxu0 0
        %356 = vmatpush.bf16.msra.mxu0 0
        %357 = vmatpush.bf16.msra.mxu0 0
        %358 = vmatpush.bf16.msra.mxu0 0
        %359 = vmatpush.bf16.msra.mxu0 0
        %360 = vmatpush.bf16.msra.mxu0 0
        %361 = vmatpush.bf16.msra.mxu0 %v349
        %362 = vmatmul.bf16.gmra.mxu0 %v345
        %v363 = vpop.f32.mrf.mxu0
        %v364 = vadd.f32 %v341, %v363
        %v365 = vpop.f32.mrf.mxu0
        %366 = vdwg.mxu0
        %367 = vmatpush.bf16.msra.mxu0 0
        %368 = vmatpush.bf16.msra.mxu0 0
        %369 = vmatpush.bf16.msra.mxu0 0
        %370 = vmatpush.bf16.msra.mxu0 0
        %371 = vmatpush.bf16.msra.mxu0 0
        %372 = vmatpush.bf16.msra.mxu0 0
        %373 = vmatpush.bf16.msra.mxu0 0
        %374 = vmatpush.bf16.msra.mxu0 %v352
        %375 = vmatmul.bf16.gmra.mxu0 %v345
        %v376 = vpop.f32.mrf.mxu0
        %v377 = vadd.f32 %v341, %v376
        %v378 = vpop.f32.mrf.mxu0
        %379 = vdwg.mxu0
        %v380 = vld [vmem:[%s3] sm:$0x7]
        %v381 = vld [vmem:[%s4] sm:$0x1f]
        %383 = vset.pattern.permute.xlu0 0
        %384 = vperm.xlu0 %383, %v381
        %v385 = vpop.permute.xlu0 %384
        %v388 = vsel %vm343, %v380, 0
        %v391 = vsel %vm347, %v326, 0
        %v394 = vsel %vm347, %v327, 0
        %396 = vmatpush.bf16.msra.mxu0 0
        %397 = vmatpush.bf16.msra.mxu0 0
        %398 = vmatpush.bf16.msra.mxu0 0
        %399 = vmatpush.bf16.msra.mxu0 0
        %400 = vmatpush.bf16.msra.mxu0 0
        %401 = vmatpush.bf16.msra.mxu0 0
        %402 = vmatpush.bf16.msra.mxu0 0
        %403 = vmatpush.bf16.msra.mxu0 %v391
        %404 = vmatmul.bf16.gmra.mxu0 %v388
        %v405 = vpop.f32.mrf.mxu0
        %v406 = vadd.f32 %v385, %v405
        %v407 = vpop.f32.mrf.mxu0
        %408 = vdwg.mxu0
        %409 = vmatpush.bf16.msra.mxu0 0
        %410 = vmatpush.bf16.msra.mxu0 0
        %411 = vmatpush.bf16.msra.mxu0 0
        %412 = vmatpush.bf16.msra.mxu0 0
        %413 = vmatpush.bf16.msra.mxu0 0
        %414 = vmatpush.bf16.msra.mxu0 0
        %415 = vmatpush.bf16.msra.mxu0 0
        %416 = vmatpush.bf16.msra.mxu0 %v394
        %417 = vmatmul.bf16.gmra.mxu0 %v388
        %v418 = vpop.f32.mrf.mxu0
        %v419 = vadd.f32 %v385, %v418
        %v420 = vpop.f32.mrf.mxu0
        %421 = vdwg.mxu0
        %v422 = vpack.c.bf16 %v364, %v364
        %v423 = vpack.c.bf16 %v377, %v377
        %v424 = vpack.c.bf16 %v406, %v406
        %v425 = vpack.c.bf16 %v419, %v419
        %426 = vxpose.binary.xlu0.c.b16.start [1/16] %v423, %v422, 128
        %427 = vxpose.binary.xlu0.c.b16.cont [2/16] 0, 0, 128
        %428 = vxpose.binary.xlu0.c.b16.cont [3/16] 0, 0, 128
        %429 = vxpose.binary.xlu0.c.b16.cont [4/16] 0, 0, 128
        %430 = vxpose.binary.xlu0.c.b16.cont [5/16] 0, 0, 128
        %431 = vxpose.binary.xlu0.c.b16.cont [6/16] 0, 0, 128
        %432 = vxpose.binary.xlu0.c.b16.cont [7/16] 0, 0, 128
        %433 = vxpose.binary.xlu0.c.b16.end [8/16] 0, 0, 128
        %v434 = vpop.trf.xlu0
        %v435 = vpop.trf.xlu0
        %v436 = vpop.trf.xlu0
        %v437 = vpop.trf.xlu0
        %v438 = vpop.trf.xlu0
        %v439 = vpop.trf.xlu0
        %v440 = vpop.trf.xlu0
        %v441 = vpop.trf.xlu0
        %v442 = vpop.trf.xlu0
        %v443 = vpop.trf.xlu0
        %v444 = vpop.trf.xlu0
        %v445 = vpop.trf.xlu0
        %v446 = vpop.trf.xlu0
        %v447 = vpop.trf.xlu0
        %v448 = vpop.trf.xlu0
        %v449 = vpop.trf.xlu0
        %vm450 = vcmask 15360
        %v452 = vsel %vm450, %v434, 0
        %v455 = vsel %vm450, %v436, 0
        %v458 = vsel %vm450, %v438, 0
        %v461 = vsel %vm450, %v440, 0
        %v464 = vsel %vm450, %v442, 0
        %v467 = vsel %vm450, %v444, 0
        %v470 = vsel %vm450, %v446, 0
        %v473 = vsel %vm450, %v448, 0
        %v476 = vsel %vm450, %v435, 0
        %v479 = vsel %vm450, %v437, 0
        %v482 = vsel %vm450, %v439, 0
        %v485 = vsel %vm450, %v441, 0
        %v488 = vsel %vm450, %v443, 0
        %v491 = vsel %vm450, %v445, 0
        %v494 = vsel %vm450, %v447, 0
        %v497 = vsel %vm450, %v449, 0
        %vm499 = vcmask 1040384
        %v501 = vsel %vm499, %v424, 0
        %v504 = vsel %vm499, %v425, 0
        %506 = vmatpush.bf16.msra.mxu0 0
        %507 = vmatpush.bf16.msra.mxu0 0
        %508 = vmatpush.bf16.msra.mxu0 0
        %509 = vmatpush.bf16.msra.mxu0 0
        %510 = vmatpush.bf16.msra.mxu0 0
        %511 = vmatpush.bf16.msra.mxu0 0
        %512 = vmatpush.bf16.msra.mxu0 0
        %513 = vmatpush.bf16.msra.mxu0 %v501
        %514 = vmatmul.bf16.gmra.mxu0 %v452
        %v515 = vpop.f32.mrf.mxu0
        %v516 = vadd.f32 0.0, %v515
        %v517 = vpop.f32.mrf.mxu0
        %v518 = vadd.f32 0.0, %v517
        %519 = vmatmul.bf16.gmra.mxu0 %v455
        %v520 = vpop.f32.mrf.mxu0
        %v521 = vadd.f32 0.0, %v520
        %v522 = vpop.f32.mrf.mxu0
        %v523 = vadd.f32 0.0, %v522
        %524 = vmatmul.bf16.gmra.mxu0 %v458
        %v525 = vpop.f32.mrf.mxu0
        %v526 = vadd.f32 0.0, %v525
        %v527 = vpop.f32.mrf.mxu0
        %v528 = vadd.f32 0.0, %v527
        %529 = vmatmul.bf16.gmra.mxu0 %v461
        %v530 = vpop.f32.mrf.mxu0
        %v531 = vadd.f32 0.0, %v530
        %v532 = vpop.f32.mrf.mxu0
        %v533 = vadd.f32 0.0, %v532
        %534 = vmatmul.bf16.gmra.mxu0 %v464
        %v535 = vpop.f32.mrf.mxu0
        %v536 = vadd.f32 0.0, %v535
        %v537 = vpop.f32.mrf.mxu0
        %v538 = vadd.f32 0.0, %v537
        %539 = vmatmul.bf16.gmra.mxu0 %v467
        %v540 = vpop.f32.mrf.mxu0
        %v541 = vadd.f32 0.0, %v540
        %v542 = vpop.f32.mrf.mxu0
        %v543 = vadd.f32 0.0, %v542
        %544 = vmatmul.bf16.gmra.mxu0 %v470
        %v545 = vpop.f32.mrf.mxu0
        %v546 = vadd.f32 0.0, %v545
        %v547 = vpop.f32.mrf.mxu0
        %v548 = vadd.f32 0.0, %v547
        %549 = vmatmul.bf16.gmra.mxu0 %v473
        %v550 = vpop.f32.mrf.mxu0
        %v551 = vadd.f32 0.0, %v550
        %v552 = vpop.f32.mrf.mxu0
        %v553 = vadd.f32 0.0, %v552
        %554 = vmatmul.bf16.gmra.mxu0 %v476
        %v555 = vpop.f32.mrf.mxu0
        %v556 = vadd.f32 0.0, %v555
        %v557 = vpop.f32.mrf.mxu0
        %v558 = vadd.f32 0.0, %v557
        %559 = vmatmul.bf16.gmra.mxu0 %v479
        %v560 = vpop.f32.mrf.mxu0
        %v561 = vadd.f32 0.0, %v560
        %v562 = vpop.f32.mrf.mxu0
        %v563 = vadd.f32 0.0, %v562
        %564 = vmatmul.bf16.gmra.mxu0 %v482
        %v565 = vpop.f32.mrf.mxu0
        %v566 = vadd.f32 0.0, %v565
        %v567 = vpop.f32.mrf.mxu0
        %v568 = vadd.f32 0.0, %v567
        %569 = vmatmul.bf16.gmra.mxu0 %v485
        %v570 = vpop.f32.mrf.mxu0
        %v571 = vadd.f32 0.0, %v570
        %v572 = vpop.f32.mrf.mxu0
        %v573 = vadd.f32 0.0, %v572
        %574 = vmatmul.bf16.gmra.mxu0 %v488
        %v575 = vpop.f32.mrf.mxu0
        %v576 = vadd.f32 0.0, %v575
        %v577 = vpop.f32.mrf.mxu0
        %v578 = vadd.f32 0.0, %v577
        %579 = vmatmul.bf16.gmra.mxu0 %v491
        %v580 = vpop.f32.mrf.mxu0
        %v581 = vadd.f32 0.0, %v580
        %v582 = vpop.f32.mrf.mxu0
        %v583 = vadd.f32 0.0, %v582
        %584 = vmatmul.bf16.gmra.mxu0 %v494
        %v585 = vpop.f32.mrf.mxu0
        %v586 = vadd.f32 0.0, %v585
        %v587 = vpop.f32.mrf.mxu0
        %v588 = vadd.f32 0.0, %v587
        %589 = vmatmul.bf16.gmra.mxu0 %v497
        %v590 = vpop.f32.mrf.mxu0
        %v591 = vadd.f32 0.0, %v590
        %v592 = vpop.f32.mrf.mxu0
        %v593 = vadd.f32 0.0, %v592
        %594 = vdwg.mxu0
        %595 = vmatpush.bf16.msra.mxu0 0
        %596 = vmatpush.bf16.msra.mxu0 0
        %597 = vmatpush.bf16.msra.mxu0 0
        %598 = vmatpush.bf16.msra.mxu0 0
        %599 = vmatpush.bf16.msra.mxu0 0
        %600 = vmatpush.bf16.msra.mxu0 0
        %601 = vmatpush.bf16.msra.mxu0 0
        %602 = vmatpush.bf16.msra.mxu0 %v504
        %603 = vmatmul.bf16.gmra.mxu0 %v452
        %v604 = vpop.f32.mrf.mxu0
        %v605 = vadd.f32 0.0, %v604
        %v606 = vpop.f32.mrf.mxu0
        %v607 = vadd.f32 0.0, %v606
        %608 = vmatmul.bf16.gmra.mxu0 %v455
        %v609 = vpop.f32.mrf.mxu0
        %v610 = vadd.f32 0.0, %v609
        %v611 = vpop.f32.mrf.mxu0
        %v612 = vadd.f32 0.0, %v611
        %613 = vmatmul.bf16.gmra.mxu0 %v458
        %v614 = vpop.f32.mrf.mxu0
        %v615 = vadd.f32 0.0, %v614
        %v616 = vpop.f32.mrf.mxu0
        %v617 = vadd.f32 0.0, %v616
        %618 = vmatmul.bf16.gmra.mxu0 %v461
        %v619 = vpop.f32.mrf.mxu0
        %v620 = vadd.f32 0.0, %v619
        %v621 = vpop.f32.mrf.mxu0
        %v622 = vadd.f32 0.0, %v621
        %623 = vmatmul.bf16.gmra.mxu0 %v464
        %v624 = vpop.f32.mrf.mxu0
        %v625 = vadd.f32 0.0, %v624
        %v626 = vpop.f32.mrf.mxu0
        %v627 = vadd.f32 0.0, %v626
        %628 = vmatmul.bf16.gmra.mxu0 %v467
        %v629 = vpop.f32.mrf.mxu0
        %v630 = vadd.f32 0.0, %v629
        %v631 = vpop.f32.mrf.mxu0
        %v632 = vadd.f32 0.0, %v631
        %633 = vmatmul.bf16.gmra.mxu0 %v470
        %v634 = vpop.f32.mrf.mxu0
        %v635 = vadd.f32 0.0, %v634
        %v636 = vpop.f32.mrf.mxu0
        %v637 = vadd.f32 0.0, %v636
        %638 = vmatmul.bf16.gmra.mxu0 %v473
        %v639 = vpop.f32.mrf.mxu0
        %v640 = vadd.f32 0.0, %v639
        %v641 = vpop.f32.mrf.mxu0
        %v642 = vadd.f32 0.0, %v641
        %643 = vmatmul.bf16.gmra.mxu0 %v476
        %v644 = vpop.f32.mrf.mxu0
        %v645 = vadd.f32 0.0, %v644
        %v646 = vpop.f32.mrf.mxu0
        %v647 = vadd.f32 0.0, %v646
        %648 = vmatmul.bf16.gmra.mxu0 %v479
        %v649 = vpop.f32.mrf.mxu0
        %v650 = vadd.f32 0.0, %v649
        %v651 = vpop.f32.mrf.mxu0
        %v652 = vadd.f32 0.0, %v651
        %653 = vmatmul.bf16.gmra.mxu0 %v482
        %v654 = vpop.f32.mrf.mxu0
        %v655 = vadd.f32 0.0, %v654
        %v656 = vpop.f32.mrf.mxu0
        %v657 = vadd.f32 0.0, %v656
        %658 = vmatmul.bf16.gmra.mxu0 %v485
        %v659 = vpop.f32.mrf.mxu0
        %v660 = vadd.f32 0.0, %v659
        %v661 = vpop.f32.mrf.mxu0
        %v662 = vadd.f32 0.0, %v661
        %663 = vmatmul.bf16.gmra.mxu0 %v488
        %v664 = vpop.f32.mrf.mxu0
        %v665 = vadd.f32 0.0, %v664
        %v666 = vpop.f32.mrf.mxu0
        %v667 = vadd.f32 0.0, %v666
        %668 = vmatmul.bf16.gmra.mxu0 %v491
        %v669 = vpop.f32.mrf.mxu0
        %v670 = vadd.f32 0.0, %v669
        %v671 = vpop.f32.mrf.mxu0
        %v672 = vadd.f32 0.0, %v671
        %673 = vmatmul.bf16.gmra.mxu0 %v494
        %v674 = vpop.f32.mrf.mxu0
        %v675 = vadd.f32 0.0, %v674
        %v676 = vpop.f32.mrf.mxu0
        %v677 = vadd.f32 0.0, %v676
        %678 = vmatmul.bf16.gmra.mxu0 %v497
        %v679 = vpop.f32.mrf.mxu0
        %v680 = vadd.f32 0.0, %v679
        %v681 = vpop.f32.mrf.mxu0
        %v682 = vadd.f32 0.0, %v681
        %683 = vdwg.mxu0
        %v684 = vmax.f32 %v516, %v605
        %685 = vmax.xlane.f32.xlu0 %v684
        %v686 = vpop.xlane.xlu0 %685
        %v687 = vmax.f32 %v518, %v607
        %688 = vmax.xlane.f32.xlu0 %v687
        %v689 = vpop.xlane.xlu0 %688
        %v690 = vmax.f32 %v521, %v610
        %691 = vmax.xlane.f32.xlu0 %v690
        %v692 = vpop.xlane.xlu0 %691
        %v693 = vmax.f32 %v523, %v612
        %694 = vmax.xlane.f32.xlu0 %v693
        %v695 = vpop.xlane.xlu0 %694
        %v696 = vmax.f32 %v526, %v615
        %697 = vmax.xlane.f32.xlu0 %v696
        %v698 = vpop.xlane.xlu0 %697
        %v699 = vmax.f32 %v528, %v617
        %700 = vmax.xlane.f32.xlu0 %v699
        %v701 = vpop.xlane.xlu0 %700
        %v702 = vmax.f32 %v531, %v620
        %703 = vmax.xlane.f32.xlu0 %v702
        %v704 = vpop.xlane.xlu0 %703
        %v705 = vmax.f32 %v533, %v622
        %706 = vmax.xlane.f32.xlu0 %v705
        %v707 = vpop.xlane.xlu0 %706
        %v708 = vmax.f32 %v536, %v625
        %709 = vmax.xlane.f32.xlu0 %v708
        %v710 = vpop.xlane.xlu0 %709
        %v711 = vmax.f32 %v538, %v627
        %712 = vmax.xlane.f32.xlu0 %v711
        %v713 = vpop.xlane.xlu0 %712
        %v714 = vmax.f32 %v541, %v630
        %715 = vmax.xlane.f32.xlu0 %v714
        %v716 = vpop.xlane.xlu0 %715
        %v717 = vmax.f32 %v543, %v632
        %718 = vmax.xlane.f32.xlu0 %v717
        %v719 = vpop.xlane.xlu0 %718
        %v720 = vmax.f32 %v546, %v635
        %721 = vmax.xlane.f32.xlu0 %v720
        %v722 = vpop.xlane.xlu0 %721
        %v723 = vmax.f32 %v548, %v637
        %724 = vmax.xlane.f32.xlu0 %v723
        %v725 = vpop.xlane.xlu0 %724
        %v726 = vmax.f32 %v551, %v640
        %727 = vmax.xlane.f32.xlu0 %v726
        %v728 = vpop.xlane.xlu0 %727
        %v729 = vmax.f32 %v553, %v642
        %730 = vmax.xlane.f32.xlu0 %v729
        %v731 = vpop.xlane.xlu0 %730
        %v732 = vmax.f32 %v556, %v645
        %733 = vmax.xlane.f32.xlu0 %v732
        %v734 = vpop.xlane.xlu0 %733
        %v735 = vmax.f32 %v558, %v647
        %736 = vmax.xlane.f32.xlu0 %v735
        %v737 = vpop.xlane.xlu0 %736
        %v738 = vmax.f32 %v561, %v650
        %739 = vmax.xlane.f32.xlu0 %v738
        %v740 = vpop.xlane.xlu0 %739
        %v741 = vmax.f32 %v563, %v652
        %742 = vmax.xlane.f32.xlu0 %v741
        %v743 = vpop.xlane.xlu0 %742
        %v744 = vmax.f32 %v566, %v655
        %745 = vmax.xlane.f32.xlu0 %v744
        %v746 = vpop.xlane.xlu0 %745
        %v747 = vmax.f32 %v568, %v657
        %748 = vmax.xlane.f32.xlu0 %v747
        %v749 = vpop.xlane.xlu0 %748
        %v750 = vmax.f32 %v571, %v660
        %751 = vmax.xlane.f32.xlu0 %v750
        %v752 = vpop.xlane.xlu0 %751
        %v753 = vmax.f32 %v573, %v662
        %754 = vmax.xlane.f32.xlu0 %v753
        %v755 = vpop.xlane.xlu0 %754
        %v756 = vmax.f32 %v576, %v665
        %757 = vmax.xlane.f32.xlu0 %v756
        %v758 = vpop.xlane.xlu0 %757
        %v759 = vmax.f32 %v578, %v667
        %760 = vmax.xlane.f32.xlu0 %v759
        %v761 = vpop.xlane.xlu0 %760
        %v762 = vmax.f32 %v581, %v670
        %763 = vmax.xlane.f32.xlu0 %v762
        %v764 = vpop.xlane.xlu0 %763
        %v765 = vmax.f32 %v583, %v672
        %766 = vmax.xlane.f32.xlu0 %v765
        %v767 = vpop.xlane.xlu0 %766
        %v768 = vmax.f32 %v586, %v675
        %769 = vmax.xlane.f32.xlu0 %v768
        %v770 = vpop.xlane.xlu0 %769
        %v771 = vmax.f32 %v588, %v677
        %772 = vmax.xlane.f32.xlu0 %v771
        %v773 = vpop.xlane.xlu0 %772
        %v774 = vmax.f32 %v591, %v680
        %775 = vmax.xlane.f32.xlu0 %v774
        %v776 = vpop.xlane.xlu0 %775
        %v777 = vmax.f32 %v593, %v682
        %778 = vmax.xlane.f32.xlu0 %v777
        %v779 = vpop.xlane.xlu0 %778
        %v780 = vsub.f32 %v516, %v686
        %v781 = vsub.f32 %v605, %v686
        %v782 = vsub.f32 %v518, %v689
        %v783 = vsub.f32 %v607, %v689
        %v784 = vsub.f32 %v521, %v692
        %v785 = vsub.f32 %v610, %v692
        %v786 = vsub.f32 %v523, %v695
        %v787 = vsub.f32 %v612, %v695
        %v788 = vsub.f32 %v526, %v698
        %v789 = vsub.f32 %v615, %v698
        %v790 = vsub.f32 %v528, %v701
        %v791 = vsub.f32 %v617, %v701
        %v792 = vsub.f32 %v531, %v704
        %v793 = vsub.f32 %v620, %v704
        %v794 = vsub.f32 %v533, %v707
        %v795 = vsub.f32 %v622, %v707
        %v796 = vsub.f32 %v536, %v710
        %v797 = vsub.f32 %v625, %v710
        %v798 = vsub.f32 %v538, %v713
        %v799 = vsub.f32 %v627, %v713
        %v800 = vsub.f32 %v541, %v716
        %v801 = vsub.f32 %v630, %v716
        %v802 = vsub.f32 %v543, %v719
        %v803 = vsub.f32 %v632, %v719
        %v804 = vsub.f32 %v546, %v722
        %v805 = vsub.f32 %v635, %v722
        %v806 = vsub.f32 %v548, %v725
        %v807 = vsub.f32 %v637, %v725
        %v808 = vsub.f32 %v551, %v728
        %v809 = vsub.f32 %v640, %v728
        %v810 = vsub.f32 %v553, %v731
        %v811 = vsub.f32 %v642, %v731
        %v812 = vsub.f32 %v556, %v734
        %v813 = vsub.f32 %v645, %v734
        %v814 = vsub.f32 %v558, %v737
        %v815 = vsub.f32 %v647, %v737
        %v816 = vsub.f32 %v561, %v740
        %v817 = vsub.f32 %v650, %v740
        %v818 = vsub.f32 %v563, %v743
        %v819 = vsub.f32 %v652, %v743
        %v820 = vsub.f32 %v566, %v746
        %v821 = vsub.f32 %v655, %v746
        %v822 = vsub.f32 %v568, %v749
        %v823 = vsub.f32 %v657, %v749
        %v824 = vsub.f32 %v571, %v752
        %v825 = vsub.f32 %v660, %v752
        %v826 = vsub.f32 %v573, %v755
        %v827 = vsub.f32 %v662, %v755
        %v828 = vsub.f32 %v576, %v758
        %v829 = vsub.f32 %v665, %v758
        %v830 = vsub.f32 %v578, %v761
        %v831 = vsub.f32 %v667, %v761
        %v832 = vsub.f32 %v581, %v764
        %v833 = vsub.f32 %v670, %v764
        %v834 = vsub.f32 %v583, %v767
        %v835 = vsub.f32 %v672, %v767
        %v836 = vsub.f32 %v586, %v770
        %v837 = vsub.f32 %v675, %v770
        %v838 = vsub.f32 %v588, %v773
        %v839 = vsub.f32 %v677, %v773
        %v840 = vsub.f32 %v591, %v776
        %v841 = vsub.f32 %v680, %v776
        %v842 = vsub.f32 %v593, %v779
        %v843 = vsub.f32 %v682, %v779
        %v844 = vmul.f32 %v780, 1.442695
        %v845 = vpow.pop %v844
        %v846 = vmul.f32 %v781, 1.442695
        %v847 = vpow.pop %v846
        %v848 = vmul.f32 %v782, 1.442695
        %v849 = vpow.pop %v848
        %v850 = vmul.f32 %v783, 1.442695
        %v851 = vpow.pop %v850
        %v852 = vmul.f32 %v784, 1.442695
        %v853 = vpow.pop %v852
        %v854 = vmul.f32 %v785, 1.442695
        %v855 = vpow.pop %v854
        %v856 = vmul.f32 %v786, 1.442695
        %v857 = vpow.pop %v856
        %v858 = vmul.f32 %v787, 1.442695
        %v859 = vpow.pop %v858
        %v860 = vmul.f32 %v788, 1.442695
        %v861 = vpow.pop %v860
        %v862 = vmul.f32 %v789, 1.442695
        %v863 = vpow.pop %v862
        %v864 = vmul.f32 %v790, 1.442695
        %v865 = vpow.pop %v864
        %v866 = vmul.f32 %v791, 1.442695
        %v867 = vpow.pop %v866
        %v868 = vmul.f32 %v792, 1.442695
        %v869 = vpow.pop %v868
        %v870 = vmul.f32 %v793, 1.442695
        %v871 = vpow.pop %v870
        %v872 = vmul.f32 %v794, 1.442695
        %v873 = vpow.pop %v872
        %v874 = vmul.f32 %v795, 1.442695
        %v875 = vpow.pop %v874
        %v876 = vmul.f32 %v796, 1.442695
        %v877 = vpow.pop %v876
        %v878 = vmul.f32 %v797, 1.442695
        %v879 = vpow.pop %v878
        %v880 = vmul.f32 %v798, 1.442695
        %v881 = vpow.pop %v880
        %v882 = vmul.f32 %v799, 1.442695
        %v883 = vpow.pop %v882
        %v884 = vmul.f32 %v800, 1.442695
        %v885 = vpow.pop %v884
        %v886 = vmul.f32 %v801, 1.442695
        %v887 = vpow.pop %v886
        %v888 = vmul.f32 %v802, 1.442695
        %v889 = vpow.pop %v888
        %v890 = vmul.f32 %v803, 1.442695
        %v891 = vpow.pop %v890
        %v892 = vmul.f32 %v804, 1.442695
        %v893 = vpow.pop %v892
        %v894 = vmul.f32 %v805, 1.442695
        %v895 = vpow.pop %v894
        %v896 = vmul.f32 %v806, 1.442695
        %v897 = vpow.pop %v896
        %v898 = vmul.f32 %v807, 1.442695
        %v899 = vpow.pop %v898
        %v900 = vmul.f32 %v808, 1.442695
        %v901 = vpow.pop %v900
        %v902 = vmul.f32 %v809, 1.442695
        %v903 = vpow.pop %v902
        %v904 = vmul.f32 %v810, 1.442695
        %v905 = vpow.pop %v904
        %v906 = vmul.f32 %v811, 1.442695
        %v907 = vpow.pop %v906
        %v908 = vmul.f32 %v812, 1.442695
        %v909 = vpow.pop %v908
        %v910 = vmul.f32 %v813, 1.442695
        %v911 = vpow.pop %v910
        %v912 = vmul.f32 %v814, 1.442695
        %v913 = vpow.pop %v912
        %v914 = vmul.f32 %v815, 1.442695
        %v915 = vpow.pop %v914
        %v916 = vmul.f32 %v816, 1.442695
        %v917 = vpow.pop %v916
        %v918 = vmul.f32 %v817, 1.442695
        %v919 = vpow.pop %v918
        %v920 = vmul.f32 %v818, 1.442695
        %v921 = vpow.pop %v920
        %v922 = vmul.f32 %v819, 1.442695
        %v923 = vpow.pop %v922
        %v924 = vmul.f32 %v820, 1.442695
        %v925 = vpow.pop %v924
        %v926 = vmul.f32 %v821, 1.442695
        %v927 = vpow.pop %v926
        %v928 = vmul.f32 %v822, 1.442695
        %v929 = vpow.pop %v928
        %v930 = vmul.f32 %v823, 1.442695
        %v931 = vpow.pop %v930
        %v932 = vmul.f32 %v824, 1.442695
        %v933 = vpow.pop %v932
        %v934 = vmul.f32 %v825, 1.442695
        %v935 = vpow.pop %v934
        %v936 = vmul.f32 %v826, 1.442695
        %v937 = vpow.pop %v936
        %v938 = vmul.f32 %v827, 1.442695
        %v939 = vpow.pop %v938
        %v940 = vmul.f32 %v828, 1.442695
        %v941 = vpow.pop %v940
        %v942 = vmul.f32 %v829, 1.442695
        %v943 = vpow.pop %v942
        %v944 = vmul.f32 %v830, 1.442695
        %v945 = vpow.pop %v944
        %v946 = vmul.f32 %v831, 1.442695
        %v947 = vpow.pop %v946
        %v948 = vmul.f32 %v832, 1.442695
        %v949 = vpow.pop %v948
        %v950 = vmul.f32 %v833, 1.442695
        %v951 = vpow.pop %v950
        %v952 = vmul.f32 %v834, 1.442695
        %v953 = vpow.pop %v952
        %v954 = vmul.f32 %v835, 1.442695
        %v955 = vpow.pop %v954
        %v956 = vmul.f32 %v836, 1.442695
        %v957 = vpow.pop %v956
        %v958 = vmul.f32 %v837, 1.442695
        %v959 = vpow.pop %v958
        %v960 = vmul.f32 %v838, 1.442695
        %v961 = vpow.pop %v960
        %v962 = vmul.f32 %v839, 1.442695
        %v963 = vpow.pop %v962
        %v964 = vmul.f32 %v840, 1.442695
        %v965 = vpow.pop %v964
        %v966 = vmul.f32 %v841, 1.442695
        %v967 = vpow.pop %v966
        %v968 = vmul.f32 %v842, 1.442695
        %v969 = vpow.pop %v968
        %v970 = vmul.f32 %v843, 1.442695
        %v971 = vpow.pop %v970
        %v972 = vpack.c.bf16 %v849, %v845
        %v973 = vpack.c.bf16 %v851, %v847
        %v974 = vpack.c.bf16 %v857, %v853
        %v975 = vpack.c.bf16 %v859, %v855
        %v976 = vpack.c.bf16 %v865, %v861
        %v977 = vpack.c.bf16 %v867, %v863
        %v978 = vpack.c.bf16 %v873, %v869
        %v979 = vpack.c.bf16 %v875, %v871
        %v980 = vpack.c.bf16 %v881, %v877
        %v981 = vpack.c.bf16 %v883, %v879
        %v982 = vpack.c.bf16 %v889, %v885
        %v983 = vpack.c.bf16 %v891, %v887
        %v984 = vpack.c.bf16 %v897, %v893
        %v985 = vpack.c.bf16 %v899, %v895
        %v986 = vpack.c.bf16 %v905, %v901
        %v987 = vpack.c.bf16 %v907, %v903
        %v988 = vpack.c.bf16 %v913, %v909
        %v989 = vpack.c.bf16 %v915, %v911
        %v990 = vpack.c.bf16 %v921, %v917
        %v991 = vpack.c.bf16 %v923, %v919
        %v992 = vpack.c.bf16 %v929, %v925
        %v993 = vpack.c.bf16 %v931, %v927
        %v994 = vpack.c.bf16 %v937, %v933
        %v995 = vpack.c.bf16 %v939, %v935
        %v996 = vpack.c.bf16 %v945, %v941
        %v997 = vpack.c.bf16 %v947, %v943
        %v998 = vpack.c.bf16 %v953, %v949
        %v999 = vpack.c.bf16 %v955, %v951
        %v1000 = vpack.c.bf16 %v961, %v957
        %v1001 = vpack.c.bf16 %v963, %v959
        %v1002 = vpack.c.bf16 %v969, %v965
        %v1003 = vpack.c.bf16 %v971, %v967
        %v1006 = vrot.slane %v424, 1
        %v1007 = vrot.slane %v425, 1
        %1010 = vmatpush.bf16.xpose.msra.mxu0 %v986
        %1011 = vmatpush.bf16.xpose.msra.mxu0 %v984
        %1012 = vmatpush.bf16.xpose.msra.mxu0 %v982
        %1013 = vmatpush.bf16.xpose.msra.mxu0 %v980
        %1014 = vmatpush.bf16.xpose.msra.mxu0 %v978
        %1015 = vmatpush.bf16.xpose.msra.mxu0 %v976
        %1016 = vmatpush.bf16.xpose.msra.mxu0 %v974
        %1017 = vmatpush.bf16.xpose.msra.mxu0 %v972
        %1018 = vmatmul.bf16.gmra.mxu0 %v1006
        %v1019 = vpop.f32.mrf.mxu0
        %v1020 = vadd.f32 0.0, %v1019
        %v1021 = vpop.f32.mrf.mxu0
        %1022 = vdwg.mxu0
        %1023 = vmatpush.bf16.xpose.msra.mxu0 %v987
        %1024 = vmatpush.bf16.xpose.msra.mxu0 %v985
        %1025 = vmatpush.bf16.xpose.msra.mxu0 %v983
        %1026 = vmatpush.bf16.xpose.msra.mxu0 %v981
        %1027 = vmatpush.bf16.xpose.msra.mxu0 %v979
        %1028 = vmatpush.bf16.xpose.msra.mxu0 %v977
        %1029 = vmatpush.bf16.xpose.msra.mxu0 %v975
        %1030 = vmatpush.bf16.xpose.msra.mxu0 %v973
        %1031 = vmatmul.bf16.gmra.mxu0 %v1007
        %v1032 = vpop.f32.mrf.mxu0
        %v1033 = vadd.f32 %v1020, %v1032
        %v1034 = vpop.f32.mrf.mxu0
        %1035 = vdwg.mxu0
        %1036 = vmatpush.bf16.xpose.msra.mxu0 %v1002
        %1037 = vmatpush.bf16.xpose.msra.mxu0 %v1000
        %1038 = vmatpush.bf16.xpose.msra.mxu0 %v998
        %1039 = vmatpush.bf16.xpose.msra.mxu0 %v996
        %1040 = vmatpush.bf16.xpose.msra.mxu0 %v994
        %1041 = vmatpush.bf16.xpose.msra.mxu0 %v992
        %1042 = vmatpush.bf16.xpose.msra.mxu0 %v990
        %1043 = vmatpush.bf16.xpose.msra.mxu0 %v988
        %1044 = vmatmul.bf16.gmra.mxu0 %v1006
        %v1045 = vpop.f32.mrf.mxu0
        %v1046 = vadd.f32 0.0, %v1045
        %v1047 = vpop.f32.mrf.mxu0
        %1048 = vdwg.mxu0
        %1049 = vmatpush.bf16.xpose.msra.mxu0 %v1003
        %1050 = vmatpush.bf16.xpose.msra.mxu0 %v1001
        %1051 = vmatpush.bf16.xpose.msra.mxu0 %v999
        %1052 = vmatpush.bf16.xpose.msra.mxu0 %v997
        %1053 = vmatpush.bf16.xpose.msra.mxu0 %v995
        %1054 = vmatpush.bf16.xpose.msra.mxu0 %v993
        %1055 = vmatpush.bf16.xpose.msra.mxu0 %v991
        %1056 = vmatpush.bf16.xpose.msra.mxu0 %v989
        %1057 = vmatmul.bf16.gmra.mxu0 %v1007
        %v1058 = vpop.f32.mrf.mxu0
        %v1059 = vadd.f32 %v1046, %v1058
        %v1060 = vpop.f32.mrf.mxu0
        %1061 = vdwg.mxu0
        %v1062 = vrcp.pop %v1033
        %v1063 = vrcp.pop %v1059
        %v1064 = vperm.slane %v1062, 2
        %v1065 = vperm.slane %v1063, 2
        %v1066 = vmul.f32 %v1033, %v1064
        %v1067 = vmul.f32 %v1059, %v1065
        %v1068 = vld [vmem:[%s5] sm:$0x3]
        %v1069 = vpack.c.bf16 %v1066, %v1066
        %v1070 = vpack.c.bf16 %v1067, %v1067
        %v1071 = vld [vmem:[%s6] sm:$0xf]
        %1073 = vset.pattern.permute.xlu0 0
        %1074 = vperm.xlu0 %1073, %v1071
        %v1075 = vpop.permute.xlu0 %1074
        %v1078 = vsel %vm450, %v1068, 0
        %v1081 = vsel %vm499, %v1069, 0
        %v1084 = vsel %vm499, %v1070, 0
        %1086 = vmatpush.bf16.msra.mxu0 0
        %1087 = vmatpush.bf16.msra.mxu0 0
        %1088 = vmatpush.bf16.msra.mxu0 0
        %1089 = vmatpush.bf16.msra.mxu0 0
        %1090 = vmatpush.bf16.msra.mxu0 0
        %1091 = vmatpush.bf16.msra.mxu0 0
        %1092 = vmatpush.bf16.msra.mxu0 0
        %1093 = vmatpush.bf16.msra.mxu0 %v1081
        %1094 = vmatmul.bf16.gmra.mxu0 %v1078
        %v1095 = vpop.f32.mrf.mxu0
        %v1096 = vadd.f32 %v1075, %v1095
        %v1097 = vpop.f32.mrf.mxu0
        %1098 = vdwg.mxu0
        %1099 = vmatpush.bf16.msra.mxu0 0
        %1100 = vmatpush.bf16.msra.mxu0 0
        %1101 = vmatpush.bf16.msra.mxu0 0
        %1102 = vmatpush.bf16.msra.mxu0 0
        %1103 = vmatpush.bf16.msra.mxu0 0
        %1104 = vmatpush.bf16.msra.mxu0 0
        %1105 = vmatpush.bf16.msra.mxu0 0
        %1106 = vmatpush.bf16.msra.mxu0 %v1084
        %1107 = vmatmul.bf16.gmra.mxu0 %v1078
        %v1108 = vpop.f32.mrf.mxu0
        %v1109 = vadd.f32 %v1075, %v1108
        %v1110 = vpop.f32.mrf.mxu0
        %1111 = vdwg.mxu0
        %1112 = vst [vmem:[#allocation1] ss:$2 sm:$0xff] %v319
        %v1113 = vld.sshfl [vmem:[#allocation1] sm:$0xff pattern:$0x75316420]
        %v1114 = vld.sshfl [vmem:[#allocation1 + $0x8] sm:$0xff pattern:$0x75316420]
        %v1117 = vadd.f32 %v1096, %v1113
        %v1118 = vadd.f32 %v1109, %v1114
        %v1121 = vrot.slane %v1118, 4
        %vm1122 = vcmask 1043456
        %v1123 = vsel %vm1122, %v1117, %v1121
        %1125 = vst [vmem:[%s310] sm:$0xff] %v1123
        %s1126 = sand.u32 %s198, 1
        %s1127 = scalar_lea.sflag [#allocation4], %s1126
        %s1128 = sand.u32 %s198, 1
        %s1129 = smul.addr %s1128, 8
        %s1130 = scalar_lea.vmem [#allocation5], %s1129
        // Predicated region
        $region53: #{tpu_custom_call.1} parent=47 // pred_check
          %p1131 = pneg %p208
        $region54: #{tpu_custom_call.1} parent=47 // pred_check_branch
          %1133 = sbr.rel (%p1131) target = $region56
        $region55: #{tpu_custom_call.1} parent=47 // pred_region
          %s1134 = smul.u32 2, %s29
          %1136 = vsyncadd %s1127, 0
          %s1137 = smul.addr %s28, 2
          %s1138 = sadd.s32 %s1134, %s1137
          %s1139 = smul.addr %s1138, 4
          %s1140 = scalar_lea.hbm %s7, %s1139
          %s1142 = sshll.u32 %s1130, 4
          %s1143 = int_to_ptr.vmem [resolvable:$true] %s1142
          %s1144 = sshll.u32 %s1140, 4
          %s1145 = int_to_ptr.hbm [resolvable:$true] %s1144
          %1147 = dma.vmem_to_hbm [thread:$0]  %s1143, 128, %s1145, %s1127
        $region56: #{tpu_custom_call.1} parent=47 // pred_fallthru
          _
      $region48: #{tpu_custom_call.1} parent=5 // pred_fallthru
        _
      %p1148 = scmp.le.s32.totalorder 2, %s19
      // Predicated region
      $region57: #{tpu_custom_call.1} parent=5 // pred_check
        %p1149 = pneg %p1148
      $region58: #{tpu_custom_call.1} parent=5 // pred_check_branch
        %1151 = sbr.rel (%p1149) target = $region60
      $region59: #{tpu_custom_call.1} parent=5 // pred_region
        %s1152 = ssub.s32 %s19, 2
        // Predicated region
        $region61: #{tpu_custom_call.1} parent=59 // pred_check
          %p1153 = pneg %p214
        $region62: #{tpu_custom_call.1} parent=59 // pred_check_branch
          %1155 = sbr.rel (%p1153) target = $region64
        $region63: #{tpu_custom_call.1} parent=59 // pred_region
          %s1156 = sand.u32 %s199, 1
          %s1157 = scalar_lea.sflag [#allocation4], %s1156
          %s1158 = sand.u32 %s199, 1
          %s1159 = smul.addr %s1158, 8
          %s1160 = scalar_lea.vmem [#allocation5], %s1159
          %1162 = dma.done %s1157, 128
        $region64: #{tpu_custom_call.1} parent=59 // pred_fallthru
          _
      $region60: #{tpu_custom_call.1} parent=5 // pred_fallthru
        _
    $region6: #{tpu_custom_call.1} parent=1 // loop_footer
      %s23 = sadd.s32 1, %s19
    $region7: #{tpu_custom_call.1} parent=1 // loop_footer_branch
      %18 = sbr.rel target = $region3
    $region8: #{tpu_custom_call.1} parent=1 // loop_exit
      _
    %1163 = vsyncpa [#allocation3], 1
    %s1164 = scalar_lea.sflag [#allocation3], 1
    %1165 = vsyncpa %s1164, 1
    %1166 = vsyncpa [#allocation4], 1
    %s1167 = scalar_lea.sflag [#allocation4], 1
    %1168 = vsyncpa %s1167, 1

</llo_original>
